<compile_context>
chip_gen: v7x
topology: tpu7x:2x2x1
jax: 0.10.0
libtpu: 0.0.40
codegen_flags: <defaults>
</compile_context>

<pallas_src>
import jax
import jax.numpy as jnp
from jax.experimental import pallas as pl
from jax.experimental.pallas import tpu as pltpu


def _round_up(x: int, m: int) -> int:
    return ((x + m - 1) // m) * m


def _linear_kernel(x_ref, wt_ref, b_ref, o_ref):
    # x_ref:  (tile_m, IN)    -- one batch tile
    # wt_ref: (IN, OUT)       -- pre-transposed weight, resident across the grid
    # b_ref:  (1, OUT)        -- bias, resident across the grid
    # o_ref:  (tile_m, OUT)   -- output tile (OUT equals the full array dim)
    o_ref[...] = (
        jnp.dot(x_ref[...], wt_ref[...], preferred_element_type=jnp.float32)
        + b_ref[...]
    )


def _pick_tile_m(batch: int, in_features: int, out_features: int) -> int:
    """Pick the batch tile from the scoped-VMEM budget (static Python math)."""
    # Double-buffered x tile + double-buffered out tile, f32.
    bytes_per_row = 2 * 4 * (in_features + out_features)
    # Resident W + b (single-buffered via Buffered(1)).
    resident = 4 * (in_features * out_features + out_features)
    budget = 12 * 1024 * 1024  # stay under v5e's 16 MiB default scoped VMEM
    tile_cap = max(8, (budget - resident) // max(bytes_per_row, 1))
    tile_cap = max(8, min(2048, (tile_cap // 8) * 8))

    batch_8 = _round_up(batch, 8)
    if batch_8 <= tile_cap:
        if batch_8 >= 16:
            # Split into >= 2 grid steps so both v7x TensorCores can engage.
            half = _round_up((batch_8 + 1) // 2, 8)
            return min(half, tile_cap)
        return batch_8

    # batch_8 > tile_cap  =>  grid_m >= 2 automatically.
    # Prefer a tile that divides the (8-rounded) batch exactly so no padded
    # copy of x is materialized, without blowing up the step count (>4x).
    for t in range(tile_cap, max(8, tile_cap // 4) - 1, -8):
        if batch_8 % t == 0:
            return t
    return tile_cap


@jax.jit
def polynomial_regression_forward(x, weight, bias):
    """y = x @ weight.T + bias (nn.Linear forward) as a Pallas TPU kernel."""
    batch, in_features = x.shape
    out_features = weight.shape[0]

    # Layout plumbing (fused by XLA under jit): contract matching dims directly,
    # no in-kernel XLU relayout.
    w_t = weight.T                           # (in_features, out_features)
    bias2d = bias.reshape(1, out_features)   # (1, out_features)

    tile_m = _pick_tile_m(batch, in_features, out_features)
    batch_p = _round_up(batch, tile_m)
    if batch_p != batch:
        x = jnp.pad(x, ((0, batch_p - batch), (0, 0)))
    grid_m = batch_p // tile_m

    flops = 2 * batch_p * in_features * out_features
    bytes_accessed = 4 * (
        batch_p * in_features            # read x
        + in_features * out_features     # read W
        + out_features                   # read b
        + batch_p * out_features         # write y
    )
    vmem_needed = (
        4 * (in_features * out_features + out_features)      # resident W + b
        + 2 * 4 * tile_m * (in_features + out_features)      # dbl-buffered x/out tiles
    )

    y_padded = pl.pallas_call(
        _linear_kernel,
        out_shape=jax.ShapeDtypeStruct((batch_p, out_features), jnp.float32),
        grid=(grid_m,),
        in_specs=[
            # x: one batch tile per grid step (double-buffered by default).
            pl.BlockSpec((tile_m, in_features), lambda i: (i, 0)),
            # W / b: constant index_map -> resident, single buffer is enough.
            pl.BlockSpec((in_features, out_features), lambda i: (0, 0),
                         pipeline_mode=pl.Buffered(1)),
            pl.BlockSpec((1, out_features), lambda i: (0, 0),
                         pipeline_mode=pl.Buffered(1)),
        ],
        out_specs=pl.BlockSpec((tile_m, out_features), lambda i: (i, 0)),
        compiler_params=pltpu.CompilerParams(
            # Megacore sharding of the batch axis (effective when grid_m >= 2).
            dimension_semantics=("parallel",),
            vmem_limit_bytes=int(min(max(vmem_needed + (4 << 20), 16 << 20),
                                     48 << 20)),
        ),
        cost_estimate=pl.CostEstimate(
            flops=flops, transcendentals=0, bytes_accessed=bytes_accessed),
    )(x, w_t, bias2d)

    # Slice away any batch-row padding (no-op when batch % tile_m == 0).
    return y_padded[:batch]


if __name__ == "__main__":
    # PolynomialRegression(input_size=8, output_size=4) on a batch of 8 samples.
    batch, input_size, output_size = 8, 8, 4

    key = jax.random.PRNGKey(0)
    kx, kw, kb = jax.random.split(key, 3)

    x = jax.random.normal(kx, (batch, input_size), dtype=jnp.float32)
    # Deterministic parameter init (mimics nn.Linear's uniform(-1/sqrt(in), 1/sqrt(in))).
    bound = 1.0 / (input_size ** 0.5)
    weight = jax.random.uniform(
        kw, (output_size, input_size), minval=-bound, maxval=bound, dtype=jnp.float32
    )
    bias = jax.random.uniform(
        kb, (output_size,), minval=-bound, maxval=bound, dtype=jnp.float32
    )

    y = polynomial_regression_forward(x, weight, bias)
    y = jax.block_until_ready(y)

    # Reference check against plain JAX (same math as torch's nn.Linear).
    y_ref = x @ weight.T + bias
    assert y.shape == (batch, output_size)
    assert jnp.allclose(y, y_ref, atol=1e-5, rtol=1e-5)

    print("KERNEL_OK")
</pallas_src>

<mosaic_0001>
module attributes {stable_mosaic.version = 11 : i64} {
  func.func @_linear_kernel(%arg0: i32, %arg1: memref<8x8xf32, #tpu.memory_space<vmem>>, %arg2: memref<8x4xf32, #tpu.memory_space<vmem>>, %arg3: memref<1x4xf32, #tpu.memory_space<vmem>>, %arg4: memref<8x4xf32, #tpu.memory_space<vmem>>) attributes {dimension_semantics = [#tpu.dimension_semantics<parallel>], iteration_bounds = array<i64: 1>, scalar_prefetch = 0 : i64, scratch_operands = 0 : i64, tpu.core_type = #tpu.core_type<tc>, window_params = [{transform_indices = @transform_0, window_bounds = array<i64: 8, 8>}, {pipeline_mode = #tpu.pipeline_mode<synchronous>, transform_indices = @transform_1, window_bounds = array<i64: 8, 4>}, {pipeline_mode = #tpu.pipeline_mode<synchronous>, transform_indices = @transform_2, window_bounds = array<i64: 1, 4>}, {transform_indices = @transform_3, window_bounds = array<i64: 8, 4>}]} {
    %c0 = arith.constant 0 : index
    %c0_0 = arith.constant 0 : index
    %0 = vector.load %arg1[%c0, %c0_0] : memref<8x8xf32, #tpu.memory_space<vmem>>, vector<8x8xf32>
    %c0_1 = arith.constant 0 : index
    %c0_2 = arith.constant 0 : index
    %1 = vector.load %arg2[%c0_1, %c0_2] : memref<8x4xf32, #tpu.memory_space<vmem>>, vector<8x4xf32>
    %cst = arith.constant dense<0.000000e+00> : vector<8x4xf32>
    %2 = tpu.matmul %0, %1, %cst {dimension_numbers = #tpu.dot_dimension_numbers<[1], [0], [0], [1], [0, 0, 1, 1], [], []>} : vector<8x8xf32>, vector<8x4xf32>, vector<8x4xf32> -> vector<8x4xf32>
    %c0_3 = arith.constant 0 : index
    %c0_4 = arith.constant 0 : index
    %3 = vector.load %arg3[%c0_3, %c0_4] : memref<1x4xf32, #tpu.memory_space<vmem>>, vector<1x4xf32>
    %4 = vector.broadcast %3 : vector<1x4xf32> to vector<8x4xf32>
    %5 = arith.addf %2, %4 : vector<8x4xf32>
    %c0_5 = arith.constant 0 : index
    %c0_6 = arith.constant 0 : index
    %6 = vector.load %arg4[%c0_5, %c0_6] : memref<8x4xf32, #tpu.memory_space<vmem>>, vector<8x4xf32>
    tpu.vector_store %arg4[%c0_5, %c0_6], %5 {strides = array<i32>} : memref<8x4xf32, #tpu.memory_space<vmem>>, vector<8x4xf32>,
    return
  }
  func.func @transform_0(%arg0: i32) -> (i32, i32) {
    %c0_i32 = arith.constant 0 : i32
    %c0_i32_0 = arith.constant 0 : i32
    return %arg0, %c0_i32 : i32, i32
  }
  func.func @transform_1(%arg0: i32) -> (i32, i32) {
    %c0_i32 = arith.constant 0 : i32
    %c0_i32_0 = arith.constant 0 : i32
    %c0_i32_1 = arith.constant 0 : i32
    return %c0_i32, %c0_i32_0 : i32, i32
  }
  func.func @transform_2(%arg0: i32) -> (i32, i32) {
    %c0_i32 = arith.constant 0 : i32
    %c0_i32_0 = arith.constant 0 : i32
    %c0_i32_1 = arith.constant 0 : i32
    return %c0_i32, %c0_i32_0 : i32, i32
  }
  func.func @transform_3(%arg0: i32) -> (i32, i32) {
    %c0_i32 = arith.constant 0 : i32
    %c0_i32_0 = arith.constant 0 : i32
    return %arg0, %c0_i32 : i32, i32
  }
}

</mosaic_0001>

<llo_original>
// kernel: polynomial_regression_forward.1
$region0: #{polynomial_regression_forward.1}
  #allocation0 [shape = 'u32[]', space=smem, size = 0x4, offset = 0x4, fixed_abs, tag = 'smem constant byte address 0x4 - core index']
  #allocation1 [shape = 'u32[144,128]{1,0:T(1,128)}', space=vmem, size = 0x12000, scoped, tag = 'internal scratch']
  %s0 = inlined_call_operand.vmem [shape: f32[8,8], index: 0, kind: input, shape index: {}]
  %s1 = inlined_call_operand.vmem [shape: f32[8,4], index: 1, kind: input, shape index: {}]
  %s2 = inlined_call_operand.vmem [shape: f32[1,4], index: 2, kind: input, shape index: {}]
  %s3 = inlined_call_operand.vmem [shape: f32[8,4], index: 3, kind: output, shape index: {}]
  %s4 = sld [smem:[#allocation0]]
  $region22: #{polynomial_regression_forward.1} parent=0
    _
  %s6 = ssub.s32 1, %s4
  %s7 = scalar_select 0, %s6, %s4
  // Predicated region
  $region2: #{polynomial_regression_forward.1} parent=0 // pred_check
    _
  $region3: #{polynomial_regression_forward.1} parent=0 // pred_check_branch
    %9 = sbr.rel (0) target = $region5
  $region4: #{polynomial_regression_forward.1} parent=0 // pred_region
    _
  $region5: #{polynomial_regression_forward.1} parent=0 // pred_fallthru
    _
  // Predicated region
  $region6: #{polynomial_regression_forward.1} parent=0 // pred_check
    _
  $region7: #{polynomial_regression_forward.1} parent=0 // pred_check_branch
    %11 = sbr.rel (0) target = $region9
  $region8: #{polynomial_regression_forward.1} parent=0 // pred_region
    _
  $region9: #{polynomial_regression_forward.1} parent=0 // pred_fallthru
    _
  // Predicated region
  $region10: #{polynomial_regression_forward.1} parent=0 // pred_check
    _
  $region11: #{polynomial_regression_forward.1} parent=0 // pred_check_branch
    %13 = sbr.rel (0) target = $region13
  $region12: #{polynomial_regression_forward.1} parent=0 // pred_region
    _
  $region13: #{polynomial_regression_forward.1} parent=0 // pred_fallthru
    _
  %v14 = vld [vmem:[%s0] sm:$0xff]
  %v15 = vld [vmem:[%s1] sm:$0xff]
  %v16 = vld [vmem:[%s2] sm:$0x1]
  %v18 = vlaneseq
  %v19 = vshrl.u32 %v18, 7
  %v20 = vsub.s32 0, %v19
  %v21 = vrot.slane %v16, %v20
  %vm23 = vcmask 64512
  %v25 = vsel %vm23, %v14, 0
  %27 = vmatprep.subr.mxu0 0.0
  %28 = vmatpush1.msra.mxu0 %v15
  %29 = vmatprep.subr.mxu0 0.0
  %30 = vmatpush1.msra.mxu0 0.0
  %31 = vmatprep.subr.mxu0 0.0
  %32 = vmatpush1.msra.mxu0 0.0
  %33 = vmatprep.subr.mxu0 0.0
  %34 = vmatpush1.msra.mxu0 0.0
  %35 = vmatprep.subr.mxu0 0.0
  %36 = vmatpush1.msra.mxu0 0.0
  %37 = vmatprep.subr.mxu0 0.0
  %38 = vmatpush1.msra.mxu0 0.0
  %39 = vmatprep.subr.mxu0 0.0
  %40 = vmatpush1.msra.mxu0 0.0
  %41 = vmatprep.subr.mxu0 0.0
  %42 = vmatpush1.msra.mxu0 0.0
  %43 = vmatprep.subr.mxu0 0.0
  %44 = vmatpush1.msra.mxu0 0.0
  %45 = vmatprep.subr.mxu0 0.0
  %46 = vmatpush1.msra.mxu0 0.0
  %47 = vmatprep.subr.mxu0 0.0
  %48 = vmatpush1.msra.mxu0 0.0
  %49 = vmatprep.subr.mxu0 0.0
  %50 = vmatpush1.msra.mxu0 0.0
  %51 = vmatprep.subr.mxu0 0.0
  %52 = vmatpush1.msra.mxu0 0.0
  %53 = vmatprep.subr.mxu0 0.0
  %54 = vmatpush1.msra.mxu0 0.0
  %55 = vmatprep.subr.mxu0 0.0
  %56 = vmatpush1.msra.mxu0 0.0
  %57 = vmatprep.subr.mxu0 0.0
  %58 = vmatpush1.msra.mxu0 0.0
  %59 = vmatprep.subr.mxu0 0.0
  %60 = vmatpush1.msra.mxu0 0.0
  %61 = vmatprep.subr.mxu0 0.0
  %62 = vmatpush1.msra.mxu0 0.0
  %63 = vmatprep.subr.mxu0 0.0
  %64 = vmatpush1.msra.mxu0 0.0
  %65 = vmatprep.subr.mxu0 0.0
  %66 = vmatpush1.msra.mxu0 0.0
  %67 = vmatprep.subr.mxu0 0.0
  %68 = vmatpush1.msra.mxu0 0.0
  %69 = vmatprep.subr.mxu0 0.0
  %70 = vmatpush1.msra.mxu0 0.0
  %71 = vmatprep.subr.mxu0 0.0
  %72 = vmatpush1.msra.mxu0 0.0
  %73 = vmatprep.subr.mxu0 0.0
  %74 = vmatpush1.msra.mxu0 0.0
  %75 = vmatprep.subr.mxu0 0.0
  %76 = vmatpush1.msra.mxu0 0.0
  %77 = vmatprep.subr.mxu0 0.0
  %78 = vmatpush1.msra.mxu0 0.0
  %79 = vmatprep.subr.mxu0 0.0
  %80 = vmatpush1.msra.mxu0 0.0
  %81 = vmatprep.subr.mxu0 0.0
  %82 = vmatpush1.msra.mxu0 0.0
  %83 = vmatprep.subr.mxu0 0.0
  %84 = vmatpush1.msra.mxu0 0.0
  %85 = vmatprep.subr.mxu0 0.0
  %86 = vmatpush1.msra.mxu0 0.0
  %87 = vmatprep.subr.mxu0 0.0
  %88 = vmatpush1.msra.mxu0 0.0
  %89 = vmatprep.subr.mxu0 0.0
  %90 = vmatpush1.msra.mxu0 0.0
  %91 = vmatprep.mubr.f32.mxu0 0.0
  %92 = vmatmul.mubr.f32.gmra.mrb[0].mxu0 %v25
  %v93 = vpop.f32.mrb[0].mxu0
  %v94 = vadd.f32 %v21, %v93
  %v95 = vpop.f32.mrb[0].mxu0
  %96 = vdwg.mxu0
  %vm97 = vcmask 31744
  %98 = vst.msk [vmem:[%s3] sm:$0xff] %vm97, %v94
  // Predicated region
  $region14: #{polynomial_regression_forward.1} parent=0 // pred_check
    _
  $region15: #{polynomial_regression_forward.1} parent=0 // pred_check_branch
    %100 = sbr.rel (0) target = $region17
  $region16: #{polynomial_regression_forward.1} parent=0 // pred_region
    _
  $region17: #{polynomial_regression_forward.1} parent=0 // pred_fallthru
    _
  // Predicated region
  $region18: #{polynomial_regression_forward.1} parent=0 // pred_check
    _
  $region19: #{polynomial_regression_forward.1} parent=0 // pred_check_branch
    %102 = sbr.rel (0) target = $region21
  $region20: #{polynomial_regression_forward.1} parent=0 // pred_region
    _
  $region21: #{polynomial_regression_forward.1} parent=0 // pred_fallthru
    _

</llo_original>
